<compile_context>
chip_gen: v7x
topology: tpu7x:2x2x1
jax: 0.10.0
libtpu: 0.0.40
codegen_flags: <defaults>
</compile_context>

<pallas_src>
import functools

import numpy as np

import jax
import jax.numpy as jnp
from jax.experimental import pallas as pl
from jax.experimental.pallas import tpu as pltpu

_NEG_FILL = -1e30   # large-negative fill: exp() underflows to exactly 0, stays finite


def _round_up(x, m):
    return ((x + m - 1) // m) * m


def _vmem_capacity_bytes(default=64 * 1024 * 1024):
    """Best-effort query of per-core VMEM capacity (v7x: 64 MiB, v5e/v6e: 128 MiB)."""
    try:
        info = pltpu.get_tpu_info()
        for attr in ("vmem_capacity_bytes", "vmem_bytes", "vmem_size_bytes"):
            v = getattr(info, attr, None)
            if v:
                return int(v)
    except Exception:
        pass
    return default


def _oproxy_partials_kernel(lab_col_ref, batch_ref, proxies_ref, pinv_ref,   # inputs
                            parts_ref,                                       # output
                            bn_ref, d_ref, m_ref, l_ref, ns_ref,             # scratch
                            *, neg_alpha, neg_delta, proxy_dim, num_classes,
                            precision):
    f32 = jnp.float32
    B = batch_ref.shape[0]
    tC = proxies_ref.shape[0]          # class-tile width (multiple of 128)
    k = pl.program_id(1)               # class-tile step within this core's share
    n_k = pl.num_programs(1)
    tile = pl.program_id(0) * n_k + k  # global class-tile index

    # ---- first tile (per core): normalize the resident batch, init accumulators.
    @pl.when(k == 0)
    def _init():
        b = batch_ref[...].astype(f32)
        b_inv = jax.lax.rsqrt(
            jnp.maximum(jnp.sum(b * b, axis=-1, keepdims=True), 1e-24))
        bn_ref[...] = (b * b_inv).astype(bn_ref.dtype)
        d_ref[...] = jnp.zeros_like(d_ref)
        m_ref[...] = jnp.zeros_like(m_ref)   # online-LSE running max (floored at 0)
        l_ref[...] = jnp.zeros_like(l_ref)   # online-LSE running sum-of-exp
        ns_ref[...] = jnp.zeros_like(ns_ref)

    # ---- cosine sims: single MXU pass on the raw tile, then column-scale by
    #      the precomputed f32 inverse proxy norms (no per-tile (tC, D) work).
    sims = jax.lax.dot_general(
        bn_ref[...], proxies_ref[...],
        dimension_numbers=(((1,), (1,)), ((), ())),
        precision=precision,
        preferred_element_type=f32) * pinv_ref[...]                 # (B, tC)

    lab_col = lab_col_ref[...]                                      # (B, 1)
    cls_row = jax.lax.broadcasted_iota(jnp.int32, (1, tC), 1) + tile * tC
    eq = cls_row == lab_col                                         # (B, tC)

    # Positive "gather": d[i] += sims[i, labels[i]] (exactly one hit over all tiles).
    d_ref[...] = d_ref[...] + jnp.sum(
        jnp.where(eq, sims, 0.0), axis=1, keepdims=True)

    # Negative term: classes != label; padded classes excluded.
    neg_mask = jnp.logical_and(jnp.logical_not(eq), cls_row < num_classes)
    filled = jnp.where(neg_mask, neg_alpha * (sims - neg_delta), _NEG_FILL)

    if proxy_dim == 1:
        # LSE over classes: streamed online; the appended-zero slab of
        # masked_logsumexp is added during the wrapper merge (exp(-m_tot)).
        m_new = jnp.maximum(m_ref[...], jnp.max(filled, axis=1, keepdims=True))
        l_ref[...] = (l_ref[...] * jnp.exp(m_ref[...] - m_new)
                      + jnp.sum(jnp.exp(filled - m_new), axis=1, keepdims=True))
        m_ref[...] = m_new
    else:
        # LSE over the batch: columns are tile-local; all-masked (incl. padded)
        # columns contribute exactly 0, matching masked_logsumexp.
        m0 = jnp.maximum(jnp.max(filled, axis=0, keepdims=True), 0.0)   # (1, tC)
        s0 = jnp.sum(jnp.exp(filled - m0), axis=0, keepdims=True) + jnp.exp(-m0)
        ns_ref[...] = ns_ref[...] + jnp.sum(m0 + jnp.log(s0), axis=1,
                                            keepdims=True)

    # ---- last tile (per core): pack this core's partials into its output block.
    @pl.when(k == n_k - 1)
    def _write_partials():
        parts_ref[...] = jnp.zeros_like(parts_ref)
        parts_ref[0:B, 0:1] = d_ref[...]     # column 0: d[i] = sims[i, labels[i]]
        parts_ref[0:B, 1:2] = m_ref[...]     # column 1: running max   (proxy_dim=1)
        parts_ref[0:B, 2:3] = l_ref[...]     # column 2: running sumexp(proxy_dim=1)
        parts_ref[0:1, 3:4] = ns_ref[...]    # column 3: column-LSE sum (proxy_dim=0)


def oproxy_loss(batch, proxies, labels, *,
                pos_alpha=32.0, pos_delta=0.1,
                neg_alpha=32.0, neg_delta=-0.1,
                proxy_dim=0, c_tile=None,
                compute_dtype=jnp.bfloat16,
                num_core_splits=2,
                vmem_limit_bytes=None):
    """Pallas-TPU implementation of Criterion.forward (mix_extension=False).

    compute_dtype=jnp.bfloat16 (default): single-pass bf16 MXU matmul, bf16
    HBM streaming.  compute_dtype=jnp.float32: exact f32 / Precision.HIGHEST.
    Assumes labels lie in [0, C) like the PyTorch indexing path.
    """
    B, D = batch.shape
    C, D2 = proxies.shape
    assert D == D2
    f32 = jnp.float32
    cdt = np.dtype(compute_dtype)
    elem = cdt.itemsize

    D_pad = _round_up(D, 128)
    B8 = _round_up(B, 8)
    C_ceil = _round_up(C, 128)

    # ---- VMEM budget (v7x: 64 MiB/TC, v5e/v6e: 128 MiB).
    if vmem_limit_bytes is None:
        cap = _vmem_capacity_bytes()
        vmem_limit_bytes = max(32 << 20, min(int(0.75 * cap), 96 << 20))
    vmem_limit_bytes = int(vmem_limit_bytes)

    # ---- Class-tile width: target a ~2 MiB proxies tile, clamp to VMEM budget.
    if c_tile is None:
        tC = max(128, ((2 << 20) // (D_pad * elem)) // 128 * 128)
    else:
        tC = max(128, _round_up(int(c_tile), 128))
    tile_budget = int(0.70 * vmem_limit_bytes)
    fixed = 3 * B * D_pad * elem + (1 << 20)           # batch (2 bufs) + bn + slack
    per_tc = 2 * (D_pad * elem + 4) + 10 * B * 4       # proxies+pinv (x2) + f32 temps
    tC_mem = max(128, ((tile_budget - fixed) // per_tc) // 128 * 128)
    tC = min(tC, tC_mem, C_ceil)

    # ---- Split class tiles across TensorCores (2 on v7x; sequential elsewhere).
    NC = max(1, min(int(num_core_splits), C_ceil // tC))
    C_pad = _round_up(C, tC * NC)
    KT = C_pad // (tC * NC)            # class tiles per core

    # ---- Host-side prep (fused by XLA with the compute-dtype cast):
    # f32 inverse proxy norms -> in-kernel column scale stays full precision.
    p32 = proxies.astype(f32)
    p_inv = jax.lax.rsqrt(jnp.maximum(jnp.sum(p32 * p32, axis=-1), 1e-24))   # (C,)
    p_inv = jnp.pad(p_inv, (0, C_pad - C)).reshape(1, C_pad)

    xb = batch.astype(cdt)
    xp = proxies.astype(cdt)
    if D_pad != D:                       # zero lane-pad: norms & dots unchanged
        xb = jnp.pad(xb, ((0, 0), (0, D_pad - D)))
        xp = jnp.pad(xp, ((0, 0), (0, D_pad - D)))
    if C_pad != C:                       # padded classes masked out in-kernel
        xp = jnp.pad(xp, ((0, C_pad - C), (0, 0)))

    lab_col = labels.reshape(B, 1).astype(jnp.int32)

    precision = (jax.lax.Precision.HIGHEST
                 if cdt == np.dtype(np.float32) else None)

    kernel = functools.partial(
        _oproxy_partials_kernel,
        neg_alpha=float(neg_alpha), neg_delta=float(neg_delta),
        proxy_dim=int(proxy_dim), num_classes=int(C), precision=precision)

    parts = pl.pallas_call(
        kernel,
        out_shape=jax.ShapeDtypeStruct((NC * B8, 128), f32),
        grid=(NC, KT),
        in_specs=[
            pl.BlockSpec((B, 1), lambda i, k: (0, 0)),               # labels (column)
            pl.BlockSpec((B, D_pad), lambda i, k: (0, 0)),           # batch (resident)
            pl.BlockSpec((tC, D_pad), lambda i, k: (i * KT + k, 0)),  # proxies tile
            pl.BlockSpec((1, tC), lambda i, k: (0, i * KT + k)),      # 1/||proxy||
        ],
        out_specs=pl.BlockSpec((B8, 128), lambda i, k: (i, 0)),       # per-core partials
        scratch_shapes=[
            pltpu.VMEM((B, D_pad), cdt),     # normalized batch (bf16 by default)
            pltpu.VMEM((B, 1), f32),         # d[i] = sims[i, labels[i]]
            pltpu.VMEM((B, 1), f32),         # running max    (proxy_dim=1)
            pltpu.VMEM((B, 1), f32),         # running sumexp (proxy_dim=1)
            pltpu.VMEM((1, 1), f32),         # LSE column sum (proxy_dim=0)
        ],
        compiler_params=pltpu.CompilerParams(
            dimension_semantics=("parallel", "arbitrary"),
            vmem_limit_bytes=vmem_limit_bytes),
    )(lab_col, xb, xp, p_inv)

    # ---- Merge per-core partials + finalize (O(B^2), tiny, plain XLA f32).
    parts = parts.reshape(NC, B8, 128)
    d = jnp.sum(parts[:, :B, 0], axis=0)                              # (B,)

    lab = labels.astype(jnp.int32)
    same = lab[:, None] == lab[None, :]                               # (B, B)
    w_pos = -pos_alpha * (d - pos_delta)
    filled_p = jnp.where(same, w_pos[:, None], _NEG_FILL)
    mp = jnp.maximum(jnp.max(filled_p, axis=proxy_dim, keepdims=True), 0.0)
    sp = (jnp.sum(jnp.exp(filled_p - mp), axis=proxy_dim, keepdims=True)
          + jnp.exp(-mp))                  # + exp(-mp) == appended-zeros slab
    pos_term = jnp.mean(mp + jnp.log(sp))

    if proxy_dim == 1:
        m = parts[:, :B, 1]                                           # (NC, B)
        l = parts[:, :B, 2]
        m_tot = jnp.max(m, axis=0)                                    # (B,) >= 0
        l_tot = (jnp.sum(l * jnp.exp(m - m_tot[None, :]), axis=0)
                 + jnp.exp(-m_tot))
        neg_term = jnp.mean(m_tot + jnp.log(l_tot))
    else:
        neg_term = jnp.sum(parts[:, 0, 3]) / C

    return pos_term + neg_term


def oproxy_loss_reference(batch, proxies, labels, *,
                          pos_alpha=32.0, pos_delta=0.1,
                          neg_alpha=32.0, neg_delta=-0.1,
                          proxy_dim=0):
    """Pure-JAX f32 reference mirroring the PyTorch code (for verification)."""
    f32 = jnp.float32
    FMIN = jnp.finfo(f32).min
    batch = batch.astype(f32)
    proxies = proxies.astype(f32)
    bn = batch / jnp.maximum(jnp.linalg.norm(batch, axis=-1, keepdims=True), 1e-12)
    pn = proxies / jnp.maximum(jnp.linalg.norm(proxies, axis=-1, keepdims=True), 1e-12)
    sims = jnp.dot(bn, pn.T, precision=jax.lax.Precision.HIGHEST)       # (B, C)
    pos_sims = sims[:, labels]                                          # (B, B)
    same = labels[:, None] == labels[None, :]                           # (B, B)
    diff = jnp.arange(proxies.shape[0])[None, :] != labels[:, None]     # (B, C)
    w_pos = -pos_alpha * (pos_sims - pos_delta)
    w_neg = neg_alpha * (sims - neg_delta)

    def mlse(w, mask, dim):
        filled = jnp.where(mask, w, FMIN)
        dims = list(w.shape)
        dims[dim] = 1
        cat = jnp.concatenate([filled, jnp.zeros(dims, w.dtype)], axis=dim)
        lse = jax.scipy.special.logsumexp(cat, axis=dim, keepdims=True)
        any_mask = jnp.any(mask, axis=dim, keepdims=True)
        return jnp.where(any_mask, lse, 0.0)

    return mlse(w_pos, same, proxy_dim).mean() + mlse(w_neg, diff, proxy_dim).mean()


if __name__ == "__main__":
    base_key = jax.random.PRNGKey(0)

    def make_case(B, C, D, salt):
        kb, kp, kl = jax.random.split(jax.random.fold_in(base_key, salt), 3)
        batch = jax.random.normal(kb, (B, D), dtype=jnp.float32)
        proxies = jax.random.normal(kp, (C, D), dtype=jnp.float32) / 8.0  # torch.randn/8
        labels = jax.random.randint(kl, (B,), 0, C, dtype=jnp.int32)
        return batch, proxies, labels

    def check(B, C, D, proxy_dim, salt, *, c_tile=None,
              compute_dtype=jnp.bfloat16, rtol=3e-2, atol=3e-2):
        batch, proxies, labels = make_case(B, C, D, salt)
        got = jax.block_until_ready(
            oproxy_loss(batch, proxies, labels, proxy_dim=proxy_dim,
                        c_tile=c_tile, compute_dtype=compute_dtype))
        ref = jax.block_until_ready(
            oproxy_loss_reference(batch, proxies, labels, proxy_dim=proxy_dim))
        assert jnp.allclose(got, ref, rtol=rtol, atol=atol), \
            (B, C, D, proxy_dim, str(compute_dtype), float(got), float(ref))

    # Exact-precision opt-in (f32 operands, Precision.HIGHEST): tight checks.
    # C=300, c_tile=128 -> 2-way core split, 2 class tiles per core.
    check(8, 300, 48, proxy_dim=0, salt=0, c_tile=128,
          compute_dtype=jnp.float32, rtol=5e-4, atol=5e-4)
    check(8, 300, 48, proxy_dim=1, salt=1, c_tile=128,
          compute_dtype=jnp.float32, rtol=5e-4, atol=5e-4)

    # Default fast path (bf16 MXU pass + bf16 proxy stream): bf16-level checks.
    # opt-like config: n_classes=16, embed_dim=32, batch=8 (single tile).
    check(8, 16, 32, proxy_dim=0, salt=2)
    check(8, 16, 32, proxy_dim=1, salt=3)
    # multi-tile / core-split grid over padded classes (C=200 -> two 128-wide tiles).
    check(8, 200, 48, proxy_dim=0, salt=4, c_tile=128)
    check(8, 200, 48, proxy_dim=1, salt=5, c_tile=128)

    print("KERNEL_OK")
</pallas_src>

<mosaic_0001>
module attributes {stable_mosaic.version = 11 : i64} {
  func.func @_oproxy_partials_kernel(%arg0: i32, %arg1: i32, %arg2: memref<8x1xi32, #tpu.memory_space<vmem>>, %arg3: memref<8x128xf32, #tpu.memory_space<vmem>>, %arg4: memref<128x128xf32, #tpu.memory_space<vmem>>, %arg5: memref<1x128xf32, #tpu.memory_space<vmem>>, %arg6: memref<8x128xf32, #tpu.memory_space<vmem>>, %arg7: memref<8x128xf32, #tpu.memory_space<vmem>>, %arg8: memref<8x1xf32, #tpu.memory_space<vmem>>, %arg9: memref<8x1xf32, #tpu.memory_space<vmem>>, %arg10: memref<8x1xf32, #tpu.memory_space<vmem>>, %arg11: memref<1x1xf32, #tpu.memory_space<vmem>>) attributes {dimension_semantics = [#tpu.dimension_semantics<parallel>, #tpu.dimension_semantics<arbitrary>], iteration_bounds = array<i64: 2, 2>, scalar_prefetch = 0 : i64, scratch_operands = 5 : i64, tpu.core_type = #tpu.core_type<tc>, window_params = [{pipeline_mode = #tpu.pipeline_mode<synchronous>, transform_indices = @transform_0, window_bounds = array<i64: 8, 1>}, {pipeline_mode = #tpu.pipeline_mode<synchronous>, transform_indices = @transform_1, window_bounds = array<i64: 8, 128>}, {transform_indices = @transform_2, window_bounds = array<i64: 128, 128>}, {transform_indices = @transform_3, window_bounds = array<i64: 1, 128>}, {transform_indices = @transform_4, window_bounds = array<i64: 8, 128>}]} {
    %c2_i32 = arith.constant 2 : i32
    %0 = arith.muli %arg0, %c2_i32 : i32
    %1 = arith.addi %0, %arg1 : i32
    %c0_i32 = arith.constant 0 : i32
    %2 = arith.cmpi eq, %arg1, %c0_i32 : i32
    %3 = arith.extui %2 : i1 to i32
    %c0_i32_0 = arith.constant 0 : i32
    %4 = arith.cmpi ne, %3, %c0_i32_0 : i32
    scf.if %4 {
      %c0_28 = arith.constant 0 : index
      %c0_29 = arith.constant 0 : index
      %60 = vector.load %arg3[%c0_28, %c0_29] : memref<8x128xf32, #tpu.memory_space<vmem>>, vector<8x128xf32>
      %61 = arith.mulf %60, %60 : vector<8x128xf32>
      %cst_30 = arith.constant dense<0.000000e+00> : vector<8xf32>
      %62 = vector.multi_reduction <add>, %61, %cst_30 [1] : vector<8x128xf32> to vector<8xf32>
      %63 = vector.shape_cast %62 : vector<8xf32> to vector<8x1xf32>
      %cst_31 = arith.constant 1.000000e-24 : f32
      %64 = vector.broadcast %cst_31 : f32 to vector<8x1xf32>
      %65 = arith.maximumf %63, %64 : vector<8x1xf32>
      %66 = math.rsqrt %65 : vector<8x1xf32>
      %67 = vector.broadcast %66 : vector<8x1xf32> to vector<8x128xf32>
      %68 = arith.mulf %60, %67 : vector<8x128xf32>
      %c0_32 = arith.constant 0 : index
      %c0_33 = arith.constant 0 : index
      %69 = vector.load %arg7[%c0_32, %c0_33] : memref<8x128xf32, #tpu.memory_space<vmem>>, vector<8x128xf32>
      tpu.vector_store %arg7[%c0_32, %c0_33], %68 {strides = array<i32>} : memref<8x128xf32, #tpu.memory_space<vmem>>, vector<8x128xf32>,
      %cst_34 = arith.constant 0.000000e+00 : f32
      %70 = vector.broadcast %cst_34 : f32 to vector<8x1xf32>
      %c0_35 = arith.constant 0 : index
      %c0_36 = arith.constant 0 : index
      %71 = vector.load %arg8[%c0_35, %c0_36] : memref<8x1xf32, #tpu.memory_space<vmem>>, vector<8x1xf32>
      tpu.vector_store %arg8[%c0_35, %c0_36], %70 {strides = array<i32>} : memref<8x1xf32, #tpu.memory_space<vmem>>, vector<8x1xf32>,
      %cst_37 = arith.constant 0.000000e+00 : f32
      %72 = vector.broadcast %cst_37 : f32 to vector<8x1xf32>
      %c0_38 = arith.constant 0 : index
      %c0_39 = arith.constant 0 : index
      %73 = vector.load %arg9[%c0_38, %c0_39] : memref<8x1xf32, #tpu.memory_space<vmem>>, vector<8x1xf32>
      tpu.vector_store %arg9[%c0_38, %c0_39], %72 {strides = array<i32>} : memref<8x1xf32, #tpu.memory_space<vmem>>, vector<8x1xf32>,
      %cst_40 = arith.constant 0.000000e+00 : f32
      %74 = vector.broadcast %cst_40 : f32 to vector<8x1xf32>
      %c0_41 = arith.constant 0 : index
      %c0_42 = arith.constant 0 : index
      %75 = vector.load %arg10[%c0_41, %c0_42] : memref<8x1xf32, #tpu.memory_space<vmem>>, vector<8x1xf32>
      tpu.vector_store %arg10[%c0_41, %c0_42], %74 {strides = array<i32>} : memref<8x1xf32, #tpu.memory_space<vmem>>, vector<8x1xf32>,
      %cst_43 = arith.constant 0.000000e+00 : f32
      %76 = vector.broadcast %cst_43 : f32 to vector<1x1xf32>
      %c0_44 = arith.constant 0 : index
      %c0_45 = arith.constant 0 : index
      %77 = vector.load %arg11[%c0_44, %c0_45] : memref<1x1xf32, #tpu.memory_space<vmem>>, vector<1x1xf32>
      tpu.vector_store %arg11[%c0_44, %c0_45], %76 {strides = array<i32>} : memref<1x1xf32, #tpu.memory_space<vmem>>, vector<1x1xf32>,
    } else {
    }
    %c0 = arith.constant 0 : index
    %c0_1 = arith.constant 0 : index
    %5 = vector.load %arg7[%c0, %c0_1] : memref<8x128xf32, #tpu.memory_space<vmem>>, vector<8x128xf32>
    %c0_2 = arith.constant 0 : index
    %c0_3 = arith.constant 0 : index
    %6 = vector.load %arg4[%c0_2, %c0_3] : memref<128x128xf32, #tpu.memory_space<vmem>>, vector<128x128xf32>
    %cst = arith.constant dense<0.000000e+00> : vector<8x128xf32>
    %7 = tpu.matmul %5, %6, %cst {dimension_numbers = #tpu.dot_dimension_numbers<[1], [1], [0], [0], [0, 0, 1, 0], [], []>, precision = #tpu.contract_precision<fp32>} : vector<8x128xf32>, vector<128x128xf32>, vector<8x128xf32> -> vector<8x128xf32>
    %c0_4 = arith.constant 0 : index
    %c0_5 = arith.constant 0 : index
    %8 = vector.load %arg5[%c0_4, %c0_5] : memref<1x128xf32, #tpu.memory_space<vmem>>, vector<1x128xf32>
    %9 = vector.broadcast %8 : vector<1x128xf32> to vector<8x128xf32>
    %10 = arith.mulf %7, %9 : vector<8x128xf32>
    %c0_6 = arith.constant 0 : index
    %c0_7 = arith.constant 0 : index
    %11 = vector.load %arg2[%c0_6, %c0_7] : memref<8x1xi32, #tpu.memory_space<vmem>>, vector<8x1xi32>
    %12 = tpu.iota {dimensions = array<i32: 1>} : vector<1x128xi32>
    %c128_i32 = arith.constant 128 : i32
    %13 = arith.muli %1, %c128_i32 : i32
    %14 = vector.broadcast %13 : i32 to vector<1x128xi32>
    %15 = arith.addi %12, %14 : vector<1x128xi32>
    %16 = vector.broadcast %15 : vector<1x128xi32> to vector<8x128xi32>
    %17 = vector.broadcast %11 : vector<8x1xi32> to vector<8x128xi32>
    %18 = arith.cmpi eq, %16, %17 : vector<8x128xi32>
    %c0_8 = arith.constant 0 : index
    %c0_9 = arith.constant 0 : index
    %19 = vector.load %arg8[%c0_8, %c0_9] : memref<8x1xf32, #tpu.memory_space<vmem>>, vector<8x1xf32>
    %cst_10 = arith.constant 0.000000e+00 : f32
    %20 = vector.broadcast %cst_10 : f32 to vector<8x128xf32>
    %21 = arith.select %18, %10, %20 : vector<8x128xi1>, vector<8x128xf32>
    %cst_11 = arith.constant dense<0.000000e+00> : vector<8xf32>
    %22 = vector.multi_reduction <add>, %21, %cst_11 [1] : vector<8x128xf32> to vector<8xf32>
    %23 = vector.shape_cast %22 : vector<8xf32> to vector<8x1xf32>
    %24 = arith.addf %19, %23 : vector<8x1xf32>
    %c0_12 = arith.constant 0 : index
    %c0_13 = arith.constant 0 : index
    %25 = vector.load %arg8[%c0_12, %c0_13] : memref<8x1xf32, #tpu.memory_space<vmem>>, vector<8x1xf32>
    tpu.vector_store %arg8[%c0_12, %c0_13], %24 {strides = array<i32>} : memref<8x1xf32, #tpu.memory_space<vmem>>, vector<8x1xf32>,
    %cst_14 = arith.constant dense<true> : vector<8x128xi1>
    %26 = arith.xori %18, %cst_14 : vector<8x128xi1>
    %c300_i32 = arith.constant 300 : i32
    %27 = vector.broadcast %c300_i32 : i32 to vector<1x128xi32>
    %28 = arith.cmpi slt, %15, %27 : vector<1x128xi32>
    %29 = vector.broadcast %28 : vector<1x128xi1> to vector<8x128xi1>
    %30 = arith.andi %26, %29 : vector<8x128xi1>
    %cst_15 = arith.constant -1.000000e-01 : f32
    %31 = vector.broadcast %cst_15 : f32 to vector<8x128xf32>
    %32 = arith.subf %10, %31 : vector<8x128xf32>
    %cst_16 = arith.constant 3.200000e+01 : f32
    %33 = vector.broadcast %cst_16 : f32 to vector<8x128xf32>
    %34 = arith.mulf %33, %32 : vector<8x128xf32>
    %cst_17 = arith.constant -1.000000e+30 : f32
    %35 = vector.broadcast %cst_17 : f32 to vector<8x128xf32>
    %36 = arith.select %30, %34, %35 : vector<8x128xi1>, vector<8x128xf32>
    %cst_18 = arith.constant dense<0xFF800000> : vector<128xf32>
    %37 = vector.multi_reduction <maximumf>, %36, %cst_18 [0] : vector<8x128xf32> to vector<128xf32>
    %38 = vector.shape_cast %37 : vector<128xf32> to vector<1x128xf32>
    %cst_19 = arith.constant 0.000000e+00 : f32
    %39 = vector.broadcast %cst_19 : f32 to vector<1x128xf32>
    %40 = arith.maximumf %38, %39 : vector<1x128xf32>
    %41 = vector.broadcast %40 : vector<1x128xf32> to vector<8x128xf32>
    %42 = arith.subf %36, %41 : vector<8x128xf32>
    %43 = math.exp %42 : vector<8x128xf32>
    %cst_20 = arith.constant dense<0.000000e+00> : vector<128xf32>
    %44 = vector.multi_reduction <add>, %43, %cst_20 [0] : vector<8x128xf32> to vector<128xf32>
    %45 = vector.shape_cast %44 : vector<128xf32> to vector<1x128xf32>
    %cst_21 = arith.constant 0.000000e+00 : f32
    %46 = vector.broadcast %cst_21 : f32 to vector<1x128xf32>
    %47 = arith.subf %46, %40 : vector<1x128xf32>
    %48 = math.exp %47 : vector<1x128xf32>
    %49 = arith.addf %45, %48 : vector<1x128xf32>
    %c0_22 = arith.constant 0 : index
    %c0_23 = arith.constant 0 : index
    %50 = vector.load %arg11[%c0_22, %c0_23] : memref<1x1xf32, #tpu.memory_space<vmem>>, vector<1x1xf32>
    %51 = math.log %49 : vector<1x128xf32>
    %52 = arith.addf %40, %51 : vector<1x128xf32>
    %cst_24 = arith.constant dense<0.000000e+00> : vector<1xf32>
    %53 = vector.multi_reduction <add>, %52, %cst_24 [1] : vector<1x128xf32> to vector<1xf32>
    %54 = vector.shape_cast %53 : vector<1xf32> to vector<1x1xf32>
    %55 = arith.addf %50, %54 : vector<1x1xf32>
    %c0_25 = arith.constant 0 : index
    %c0_26 = arith.constant 0 : index
    %56 = vector.load %arg11[%c0_25, %c0_26] : memref<1x1xf32, #tpu.memory_space<vmem>>, vector<1x1xf32>
    tpu.vector_store %arg11[%c0_25, %c0_26], %55 {strides = array<i32>} : memref<1x1xf32, #tpu.memory_space<vmem>>, vector<1x1xf32>,
    %c1_i32 = arith.constant 1 : i32
    %57 = arith.cmpi eq, %arg1, %c1_i32 : i32
    %58 = arith.extui %57 : i1 to i32
    %c0_i32_27 = arith.constant 0 : i32
    %59 = arith.cmpi ne, %58, %c0_i32_27 : i32
    scf.if %59 {
      %cst_28 = arith.constant 0.000000e+00 : f32
      %60 = vector.broadcast %cst_28 : f32 to vector<8x128xf32>
      %c0_29 = arith.constant 0 : index
      %c0_30 = arith.constant 0 : index
      %61 = vector.load %arg6[%c0_29, %c0_30] : memref<8x128xf32, #tpu.memory_space<vmem>>, vector<8x128xf32>
      tpu.vector_store %arg6[%c0_29, %c0_30], %60 {strides = array<i32>} : memref<8x128xf32, #tpu.memory_space<vmem>>, vector<8x128xf32>,
      %c0_31 = arith.constant 0 : index
      %c0_32 = arith.constant 0 : index
      %62 = vector.load %arg8[%c0_31, %c0_32] : memref<8x1xf32, #tpu.memory_space<vmem>>, vector<8x1xf32>
      %c0_33 = arith.constant 0 : index
      %c0_34 = arith.constant 0 : index
      %63 = vector.load %arg6[%c0_33, %c0_34] : memref<8x128xf32, #tpu.memory_space<vmem>>, vector<8x1xf32>
      tpu.vector_store %arg6[%c0_33, %c0_34], %62 {strides = array<i32>} : memref<8x128xf32, #tpu.memory_space<vmem>>, vector<8x1xf32>,
      %c0_35 = arith.constant 0 : index
      %c0_36 = arith.constant 0 : index
      %64 = vector.load %arg9[%c0_35, %c0_36] : memref<8x1xf32, #tpu.memory_space<vmem>>, vector<8x1xf32>
      %c0_37 = arith.constant 0 : index
      %c1 = arith.constant 1 : index
      %65 = vector.load %arg6[%c0_37, %c1] : memref<8x128xf32, #tpu.memory_space<vmem>>, vector<8x1xf32>
      tpu.vector_store %arg6[%c0_37, %c1], %64 {strides = array<i32>} : memref<8x128xf32, #tpu.memory_space<vmem>>, vector<8x1xf32>,
      %c0_38 = arith.constant 0 : index
      %c0_39 = arith.constant 0 : index
      %66 = vector.load %arg10[%c0_38, %c0_39] : memref<8x1xf32, #tpu.memory_space<vmem>>, vector<8x1xf32>
      %c0_40 = arith.constant 0 : index
      %c2 = arith.constant 2 : index
      %67 = vector.load %arg6[%c0_40, %c2] : memref<8x128xf32, #tpu.memory_space<vmem>>, vector<8x1xf32>
      tpu.vector_store %arg6[%c0_40, %c2], %66 {strides = array<i32>} : memref<8x128xf32, #tpu.memory_space<vmem>>, vector<8x1xf32>,
      %c0_41 = arith.constant 0 : index
      %c0_42 = arith.constant 0 : index
      %68 = vector.load %arg11[%c0_41, %c0_42] : memref<1x1xf32, #tpu.memory_space<vmem>>, vector<1x1xf32>
      %c0_43 = arith.constant 0 : index
      %c3 = arith.constant 3 : index
      %69 = vector.load %arg6[%c0_43, %c3] : memref<8x128xf32, #tpu.memory_space<vmem>>, vector<1x1xf32>
      tpu.vector_store %arg6[%c0_43, %c3], %68 {strides = array<i32>} : memref<8x128xf32, #tpu.memory_space<vmem>>, vector<1x1xf32>,
    } else {
    }
    return
  }
  func.func @transform_0(%arg0: i32, %arg1: i32) -> (i32, i32) {
    %c0_i32 = arith.constant 0 : i32
    %c0_i32_0 = arith.constant 0 : i32
    %c0_i32_1 = arith.constant 0 : i32
    return %c0_i32, %c0_i32_0 : i32, i32
  }
  func.func @transform_1(%arg0: i32, %arg1: i32) -> (i32, i32) {
    %c0_i32 = arith.constant 0 : i32
    %c0_i32_0 = arith.constant 0 : i32
    %c0_i32_1 = arith.constant 0 : i32
    return %c0_i32, %c0_i32_0 : i32, i32
  }
  func.func @transform_2(%arg0: i32, %arg1: i32) -> (i32, i32) {
    %c2_i32 = arith.constant 2 : i32
    %0 = arith.muli %arg0, %c2_i32 : i32
    %1 = arith.addi %0, %arg1 : i32
    %c0_i32 = arith.constant 0 : i32
    %c0_i32_0 = arith.constant 0 : i32
    return %1, %c0_i32 : i32, i32
  }
  func.func @transform_3(%arg0: i32, %arg1: i32) -> (i32, i32) {
    %c2_i32 = arith.constant 2 : i32
    %0 = arith.muli %arg0, %c2_i32 : i32
    %1 = arith.addi %0, %arg1 : i32
    %c0_i32 = arith.constant 0 : i32
    %c0_i32_0 = arith.constant 0 : i32
    return %c0_i32, %1 : i32, i32
  }
  func.func @transform_4(%arg0: i32, %arg1: i32) -> (i32, i32) {
    %c0_i32 = arith.constant 0 : i32
    %c0_i32_0 = arith.constant 0 : i32
    return %arg0, %c0_i32 : i32, i32
  }
}

</mosaic_0001>

<llo_original>
// kernel: tpu_custom_call.1
$region0: #{tpu_custom_call.1}
  #allocation0 [shape = 'u32[]', space=smem, size = 0x4, offset = 0x4, fixed_abs, tag = 'smem constant byte address 0x4 - core index']
  #allocation1 [shape = 'u32[144,128]{1,0:T(1,128)}', space=vmem, size = 0x12000, scoped, tag = 'internal scratch']
  #allocation2 [shape = 'f32[8,128]{1,0:T(8,128)}', space=vmem, size = 0x1000, scoped, tag = 'scratch operand']
  #allocation3 [shape = 'f32[8,1]{1,0:T(8,128)}', space=vmem, size = 0x1000, scoped, tag = 'scratch operand']
  #allocation4 [shape = 'f32[8,1]{1,0:T(8,128)}', space=vmem, size = 0x1000, scoped, tag = 'scratch operand']
  #allocation5 [shape = 'f32[8,1]{1,0:T(8,128)}', space=vmem, size = 0x1000, scoped, tag = 'scratch operand']
  #allocation6 [shape = 'f32[1,1]{1,0:T(1,128)}', space=vmem, size = 0x200, scoped, tag = 'scratch operand']
  %s0 = inlined_call_operand.vmem [shape: s32[8,1], index: 0, kind: input, shape index: {}]
  %s1 = inlined_call_operand.vmem [shape: f32[8,128], index: 1, kind: input, shape index: {}]
  %s2 = inlined_call_operand.hbm [shape: f32[512,128], index: 2, kind: input, shape index: {}]
  %s3 = inlined_call_operand.vmem [shape: f32[1,512], index: 3, kind: input, shape index: {}]
  %s4 = inlined_call_operand.hbm [shape: f32[16,128], index: 4, kind: output, shape index: {}]
  %s5 = sld [smem:[#allocation0]]
  $region61: #{tpu_custom_call.1} parent=0
    _
  %s7 = ssub.s32 1, %s5
  %s8 = scalar_select 0, %s7, %s5
  $region1: #{tpu_custom_call.1} parent=0
    #allocation7 [shape = 'u8[131072]{0}', space=vmem, size = 0x20000, scoped, tag = 'input window, operand 2']
    #allocation8 [shape = 's32[2]{0}', space=sflag, size = 0x8, scoped, tag = 'scoped memory for tpu_custom_call.1']
    #allocation9 [shape = 's32[2]{0}', space=sflag, size = 0x8, scoped, tag = 'scoped memory for tpu_custom_call.1']
    #allocation10 [shape = 'u8[8192]{0}', space=vmem, size = 0x2000, scoped, tag = 'output window, operand 0']
    %9 = vsyncpa [#allocation8], 0
    %s10 = scalar_lea.sflag [#allocation8], 1
    %11 = vsyncpa %s10, 0
    %12 = vsyncpa [#allocation9], 0
    %s13 = scalar_lea.sflag [#allocation9], 1
    %14 = vsyncpa %s13, 0
    loop: start=0, step=1, limit=6
    $region2: #{tpu_custom_call.1} parent=1 // loop_pre_header
      _
    $region3: #{tpu_custom_call.1} parent=1 // loop_header
      %s16 = sphi 0, %s20
      %p17 = scmp.ge.s32.totalorder %s16, 6
      %s23 = sphi 0, %s35
      %s24 = sphi 0, %s31
      %s25 = sphi 0, %s23
      %s26 = sphi 0, %s24
      %s27 = sphi 0, %s25
      %s28 = sphi 0, %s26
      %s36 = sphi 0, %s36
      %s38 = sphi 0, %s36
      %s39 = sphi 0, %s38
      %s53 = sphi 0, %s39
      %s57 = sphi 0, %s57
      %s59 = sphi 0, %s57
      %s60 = sphi 0, %s59
      %s74 = sphi 0, %s60
      %s84 = sphi 0, %s86
      %s87 = sphi 0, %s84
      %s88 = sphi 0, %s87
      %s104 = sphi 0, %s88
      %s114 = sphi 0, %s116
      %s117 = sphi 0, %s114
      %s118 = sphi 0, %s117
      %s134 = sphi 0, %s118
      %s140 = sphi 0, %s142
      %s143 = sphi 0, %s140
      %s144 = sphi 0, %s143
      %s160 = sphi 0, %s144
    $region4: #{tpu_custom_call.1} parent=1 // loop_header_branch
      %19 = sbr.rel (%p17) target = $region8
    $region5: #{tpu_custom_call.1} parent=1 // loop_body
      %s21 = ssub.s32 %s16, 1
      %s22 = ssub.s32 %s16, 2
      %s29 = sadd.s32 1, %s24
      %p30 = scmp.ge.s32.totalorder %s29, 2
      %s31 = scalar_select %p30, 0, %s29
      %s32 = sadd.s32 1, %s23
      %s33 = scalar_select %p30, %s32, %s23
      %p34 = scmp.ge.s32.totalorder %s33, 2
      %s35 = scalar_select %p34, 0, %s33
      %s37 = sadd.s32 %s36, 1
      %p40 = scmp.eq.s32.totalorder %s16, 3
      %p41 = scmp.ne.s32.totalorder %s36, %s38
      %p42 = scmp.eq.s32.totalorder %s16, 0
      %p43 = por %p41, %p42
      %p44 = scmp.ne.s32.totalorder %s36, %s38
      %p45 = scmp.eq.s32.totalorder %s21, 3
      %p46 = por %p44, %p45
      %p47 = scmp.ne.s32.totalorder %s38, %s39
      %p48 = scmp.eq.s32.totalorder %s21, 0
      %p49 = por %p47, %p48
      %p50 = scmp.ne.s32.totalorder %s38, %s39
      %p51 = scmp.eq.s32.totalorder %s22, 3
      %p52 = por %p50, %p51
      %p54 = scmp.ne.s32.totalorder %s39, %s53
      %p55 = scmp.eq.s32.totalorder %s22, 0
      %p56 = por %p54, %p55
      %s58 = sadd.s32 %s57, 1
      %p61 = scmp.eq.s32.totalorder %s16, 3
      %p62 = scmp.ne.s32.totalorder %s57, %s59
      %p63 = scmp.eq.s32.totalorder %s16, 0
      %p64 = por %p62, %p63
      %p65 = scmp.ne.s32.totalorder %s57, %s59
      %p66 = scmp.eq.s32.totalorder %s21, 3
      %p67 = por %p65, %p66
      %p68 = scmp.ne.s32.totalorder %s59, %s60
      %p69 = scmp.eq.s32.totalorder %s21, 0
      %p70 = por %p68, %p69
      %p71 = scmp.ne.s32.totalorder %s59, %s60
      %p72 = scmp.eq.s32.totalorder %s22, 3
      %p73 = por %p71, %p72
      %p75 = scmp.ne.s32.totalorder %s60, %s74
      %p76 = scmp.eq.s32.totalorder %s22, 0
      %p77 = por %p75, %p76
      %s78 = smul.u32 %s23, 2
      %s79 = sadd.s32 %s78, %s24
      %s80 = smul.u32 %s35, 2
      %s81 = sadd.s32 %s80, %s31
      %s82 = ssub.s32 %s79, %s81
      %p83 = scmp.eq.s32.totalorder %s82, 0
      %s85 = sadd.s32 %s84, 1
      %s86 = scalar_select %p83, %s84, %s85
      %p89 = pneg %p83
      %p90 = scmp.eq.s32.totalorder %s16, 3
      %p91 = por %p89, %p90
      %p92 = scmp.ne.s32.totalorder %s84, %s87
      %p93 = scmp.eq.s32.totalorder %s16, 0
      %p94 = por %p92, %p93
      %p95 = scmp.ne.s32.totalorder %s84, %s87
      %p96 = scmp.eq.s32.totalorder %s21, 3
      %p97 = por %p95, %p96
      %p98 = scmp.ne.s32.totalorder %s87, %s88
      %p99 = scmp.eq.s32.totalorder %s21, 0
      %p100 = por %p98, %p99
      %p101 = scmp.ne.s32.totalorder %s87, %s88
      %p102 = scmp.eq.s32.totalorder %s22, 3
      %p103 = por %p101, %p102
      %p105 = scmp.ne.s32.totalorder %s88, %s104
      %p106 = scmp.eq.s32.totalorder %s22, 0
      %p107 = por %p105, %p106
      %s108 = smul.u32 %s23, 2
      %s109 = sadd.s32 %s108, %s24
      %s110 = smul.u32 %s35, 2
      %s111 = sadd.s32 %s110, %s31
      %s112 = ssub.s32 %s109, %s111
      %p113 = scmp.eq.s32.totalorder %s112, 0
      %s115 = sadd.s32 %s114, 1
      %s116 = scalar_select %p113, %s114, %s115
      %p119 = pneg %p113
      %p120 = scmp.eq.s32.totalorder %s16, 3
      %p121 = por %p119, %p120
      %p122 = scmp.ne.s32.totalorder %s114, %s117
      %p123 = scmp.eq.s32.totalorder %s16, 0
      %p124 = por %p122, %p123
      %p125 = scmp.ne.s32.totalorder %s114, %s117
      %p126 = scmp.eq.s32.totalorder %s21, 3
      %p127 = por %p125, %p126
      %p128 = scmp.ne.s32.totalorder %s117, %s118
      %p129 = scmp.eq.s32.totalorder %s21, 0
      %p130 = por %p128, %p129
      %p131 = scmp.ne.s32.totalorder %s117, %s118
      %p132 = scmp.eq.s32.totalorder %s22, 3
      %p133 = por %p131, %p132
      %p135 = scmp.ne.s32.totalorder %s118, %s134
      %p136 = scmp.eq.s32.totalorder %s22, 0
      %p137 = por %p135, %p136
      %s138 = ssub.s32 %s23, %s35
      %p139 = scmp.eq.s32.totalorder %s138, 0
      %s141 = sadd.s32 %s140, 1
      %s142 = scalar_select %p139, %s140, %s141
      %p145 = pneg %p139
      %p146 = scmp.eq.s32.totalorder %s16, 3
      %p147 = por %p145, %p146
      %p148 = scmp.ne.s32.totalorder %s140, %s143
      %p149 = scmp.eq.s32.totalorder %s16, 0
      %p150 = por %p148, %p149
      %p151 = scmp.ne.s32.totalorder %s140, %s143
      %p152 = scmp.eq.s32.totalorder %s21, 3
      %p153 = por %p151, %p152
      %p154 = scmp.ne.s32.totalorder %s143, %s144
      %p155 = scmp.eq.s32.totalorder %s21, 0
      %p156 = por %p154, %p155
      %p157 = scmp.ne.s32.totalorder %s143, %s144
      %p158 = scmp.eq.s32.totalorder %s22, 3
      %p159 = por %p157, %p158
      %p161 = scmp.ne.s32.totalorder %s144, %s160
      %p162 = scmp.eq.s32.totalorder %s22, 0
      %p163 = por %p161, %p162
      %p164 = scmp.le.s32.totalorder 1, %s16
      %p165 = scmp.lt.s32.totalorder %s16, 5
      %p166 = pnand %p164, %p165
      %p167 = pneg %p166
      // Predicated region
      $region9: #{tpu_custom_call.1} parent=5 // pred_check
        _
      $region10: #{tpu_custom_call.1} parent=5 // pred_check_branch
        %169 = sbr.rel (%p166) target = $region12
      $region11: #{tpu_custom_call.1} parent=5 // pred_region
        %s170 = ssub.s32 %s16, 1
        // Predicated region
        $region13: #{tpu_custom_call.1} parent=11 // pred_check
          %p171 = pneg %p49
        $region14: #{tpu_custom_call.1} parent=11 // pred_check_branch
          %173 = sbr.rel (%p171) target = $region16
        $region15: #{tpu_custom_call.1} parent=11 // pred_region
          _
        $region16: #{tpu_custom_call.1} parent=11 // pred_fallthru
          _
        // Predicated region
        $region17: #{tpu_custom_call.1} parent=11 // pred_check
          %p174 = pneg %p70
        $region18: #{tpu_custom_call.1} parent=11 // pred_check_branch
          %176 = sbr.rel (%p174) target = $region20
        $region19: #{tpu_custom_call.1} parent=11 // pred_region
          _
        $region20: #{tpu_custom_call.1} parent=11 // pred_fallthru
          _
      $region12: #{tpu_custom_call.1} parent=5 // pred_fallthru
        _
      %p177 = scmp.lt.s32.totalorder %s16, 4
      // Predicated region
      $region21: #{tpu_custom_call.1} parent=5 // pred_check
        %p178 = pneg %p177
      $region22: #{tpu_custom_call.1} parent=5 // pred_check_branch
        %180 = sbr.rel (%p178) target = $region24
      $region23: #{tpu_custom_call.1} parent=5 // pred_region
        // Predicated region
        $region25: #{tpu_custom_call.1} parent=23 // pred_check
          %p181 = pneg %p94
        $region26: #{tpu_custom_call.1} parent=23 // pred_check_branch
          %183 = sbr.rel (%p181) target = $region28
        $region27: #{tpu_custom_call.1} parent=23 // pred_region
          %s184 = sand.u32 %s84, 1
          %s185 = scalar_lea.sflag [#allocation8], %s184
          %s186 = sand.u32 %s84, 1
          %s187 = smul.addr %s186, 128
          %s188 = scalar_lea.vmem [#allocation7], %s187
          %s189 = smul.u32 %s23, 2
          %s190 = sadd.s32 %s189, %s24
          %s191 = smul.u32 16, %s190
          %s193 = ssub.s32 2048, 2048
          %194 = vsyncadd %s185, %s193
          %s195 = smul.addr %s191, 128
          %s196 = scalar_lea.hbm %s2, %s195
          %s197 = sshll.u32 %s188, 4
          %s198 = int_to_ptr.vmem [resolvable:$true] %s197
          %203 = dma.hbm_to_vmem [thread:$0]  %s196, 2048, %s198, %s185, 128, 128, 8
        $region28: #{tpu_custom_call.1} parent=23 // pred_fallthru
          _
        // Predicated region
        $region29: #{tpu_custom_call.1} parent=23 // pred_check
          %p204 = pneg %p124
        $region30: #{tpu_custom_call.1} parent=23 // pred_check_branch
          %206 = sbr.rel (%p204) target = $region32
        $region31: #{tpu_custom_call.1} parent=23 // pred_region
          %s207 = smul.u32 %s23, 2
          %s208 = sadd.s32 %s207, %s24
          %p209 = scmp.lt.s32.totalorder %s208, 3
          %s210 = scalar_select %p209, %s208, 3
          %s211 = scalar_lea.vmem %s3, %s210
          %s212 = smul.u32 %s23, 2
          %s213 = sadd.s32 %s212, %s24
        $region32: #{tpu_custom_call.1} parent=23 // pred_fallthru
          _
      $region24: #{tpu_custom_call.1} parent=5 // pred_fallthru
        _
      %p214 = scmp.le.s32.totalorder 1, %s16
      %p215 = scmp.lt.s32.totalorder %s16, 5
      %p216 = pnand %p214, %p215
      %p217 = pneg %p216
      // Predicated region
      $region33: #{tpu_custom_call.1} parent=5 // pred_check
        _
      $region34: #{tpu_custom_call.1} parent=5 // pred_check_branch
        %219 = sbr.rel (%p216) target = $region36
      $region35: #{tpu_custom_call.1} parent=5 // pred_region
        %s220 = ssub.s32 %s16, 1
        %s221 = sand.u32 %s87, 1
        %s222 = scalar_lea.sflag [#allocation8], %s221
        %s223 = sand.u32 %s87, 1
        %s224 = smul.addr %s223, 128
        %s225 = scalar_lea.vmem [#allocation7], %s224
        // Predicated region
        $region37: #{tpu_custom_call.1} parent=35 // pred_check
          %p226 = pneg %p100
        $region38: #{tpu_custom_call.1} parent=35 // pred_check_branch
          %228 = sbr.rel (%p226) target = $region40
        $region39: #{tpu_custom_call.1} parent=35 // pred_region
          %229 = dma.done %s222, 2048
        $region40: #{tpu_custom_call.1} parent=35 // pred_fallthru
          _
        %p230 = pneg %p49
        %p231 = pneg %p46
        %p232 = pneg %p70
        %p233 = pneg %p67
        %s234 = sand.u32 %s87, 1
        %s235 = scalar_lea.sflag [#allocation8], %s234
        %s236 = sand.u32 %s87, 1
        %s237 = smul.addr %s236, 128
        %s238 = scalar_lea.vmem [#allocation7], %s237
        %p239 = pneg %p100
        %p240 = pneg %p97
        %s241 = smul.u32 %s25, 2
        %s242 = sadd.s32 %s241, %s26
        %p243 = scmp.lt.s32.totalorder %s242, 3
        %s244 = scalar_select %p243, %s242, 3
        %s245 = scalar_lea.vmem %s3, %s244
        %p246 = pneg %p130
        %p247 = pneg %p127
        %p248 = pneg %p156
        %p249 = pneg %p153
        %s250 = sand.u32 %s143, 1
        %s251 = scalar_lea.sflag [#allocation9], %s250
        %s252 = sand.u32 %s143, 1
        %s253 = smul.addr %s252, 8
        %s254 = scalar_lea.vmem [#allocation10], %s253
        %s255 = smul.u32 %s25, 2
        %s256 = sadd.s32 %s255, %s26
        %s257 = smul.u32 16, %s256
        %s258 = smul.u32 %s25, 2
        %s259 = sadd.s32 %s258, %s26
        %p260 = scmp.lt.s32.totalorder %s259, 3
        %s261 = scalar_select %p260, %s259, 3
        %s262 = scalar_lea.vmem %s3, %s261
        %s263 = smul.u32 %s25, 2
        %s264 = sadd.s32 %s263, %s26
        %s265 = smul.u32 %s25, 2
        %s266 = sadd.s32 %s265, %s26
        %p267 = scmp.eq.s32.totalorder %s26, 0
        // Predicated region
        $region41: #{tpu_custom_call.1} parent=35 // pred_check
          %p268 = pneg %p267
        $region42: #{tpu_custom_call.1} parent=35 // pred_check_branch
          %270 = sbr.rel (%p268) target = $region44
        $region43: #{tpu_custom_call.1} parent=35 // pred_region
          %v271 = vld [vmem:[%s1] sm:$0xff]
          %v272 = vmul.f32 %v271, %v271
          %273 = vadd.xlane.f32.xlu0 %v272
          %v274 = vpop.xlane.xlu0 %273
          %v275 = vmax.f32 %v274, 1e-24
          %v276 = vrsqrt.pop %v275
          %v277 = vmul.f32 %v271, %v276
          %278 = vst [vmem:[#allocation2] sm:$0xff] %v277
          %vm279 = vcmask 7168
          %280 = vst.msk [vmem:[#allocation3] sm:$0xff] %vm279, 0.0
          %281 = vst.msk [vmem:[#allocation4] sm:$0xff] %vm279, 0.0
          %282 = vst.msk [vmem:[#allocation5] sm:$0xff] %vm279, 0.0
          %vm283 = vcmask 0
          %284 = vst.msk [vmem:[#allocation6] sm:$0x1] %vm283, 0.0
        $region44: #{tpu_custom_call.1} parent=35 // pred_fallthru
          _
        %v285 = vld [vmem:[#allocation2] sm:$0xff]
        %v286 = vld [vmem:[%s225] sm:$0xff]
        %v287 = vld [vmem:[%s225 + $0x8] sm:$0xff]
        %v288 = vld [vmem:[%s225 + $0x10] sm:$0xff]
        %v289 = vld [vmem:[%s225 + $0x18] sm:$0xff]
        %v290 = vld [vmem:[%s225 + $0x20] sm:$0xff]
        %v291 = vld [vmem:[%s225 + $0x28] sm:$0xff]
        %v292 = vld [vmem:[%s225 + $0x30] sm:$0xff]
        %v293 = vld [vmem:[%s225 + $0x38] sm:$0xff]
        %v294 = vld [vmem:[%s225 + $0x40] sm:$0xff]
        %v295 = vld [vmem:[%s225 + $0x48] sm:$0xff]
        %v296 = vld [vmem:[%s225 + $0x50] sm:$0xff]
        %v297 = vld [vmem:[%s225 + $0x58] sm:$0xff]
        %v298 = vld [vmem:[%s225 + $0x60] sm:$0xff]
        %v299 = vld [vmem:[%s225 + $0x68] sm:$0xff]
        %v300 = vld [vmem:[%s225 + $0x70] sm:$0xff]
        %v301 = vld [vmem:[%s225 + $0x78] sm:$0xff]
        %302 = vmatprep.subr.mxu0 0.0
        %v303 = vand.u32 %v286, 4294901760
        %304 = vmatpush1.xpose.msra.mxu0 %v303
        %305 = vmatprep.subr.mxu0 0.0
        %v306 = vand.u32 %v287, 4294901760
        %307 = vmatpush1.xpose.msra.mxu0 %v306
        %308 = vmatprep.subr.mxu0 0.0
        %v309 = vand.u32 %v288, 4294901760
        %310 = vmatpush1.xpose.msra.mxu0 %v309
        %311 = vmatprep.subr.mxu0 0.0
        %v312 = vand.u32 %v289, 4294901760
        %313 = vmatpush1.xpose.msra.mxu0 %v312
        %314 = vmatprep.subr.mxu0 0.0
        %v315 = vand.u32 %v290, 4294901760
        %316 = vmatpush1.xpose.msra.mxu0 %v315
        %317 = vmatprep.subr.mxu0 0.0
        %v318 = vand.u32 %v291, 4294901760
        %319 = vmatpush1.xpose.msra.mxu0 %v318
        %320 = vmatprep.subr.mxu0 0.0
        %v321 = vand.u32 %v292, 4294901760
        %322 = vmatpush1.xpose.msra.mxu0 %v321
        %323 = vmatprep.subr.mxu0 0.0
        %v324 = vand.u32 %v293, 4294901760
        %325 = vmatpush1.xpose.msra.mxu0 %v324
        %326 = vmatprep.subr.mxu0 0.0
        %v327 = vand.u32 %v294, 4294901760
        %328 = vmatpush1.xpose.msra.mxu0 %v327
        %329 = vmatprep.subr.mxu0 0.0
        %v330 = vand.u32 %v295, 4294901760
        %331 = vmatpush1.xpose.msra.mxu0 %v330
        %332 = vmatprep.subr.mxu0 0.0
        %v333 = vand.u32 %v296, 4294901760
        %334 = vmatpush1.xpose.msra.mxu0 %v333
        %335 = vmatprep.subr.mxu0 0.0
        %v336 = vand.u32 %v297, 4294901760
        %337 = vmatpush1.xpose.msra.mxu0 %v336
        %338 = vmatprep.subr.mxu0 0.0
        %v339 = vand.u32 %v298, 4294901760
        %340 = vmatpush1.xpose.msra.mxu0 %v339
        %341 = vmatprep.subr.mxu0 0.0
        %v342 = vand.u32 %v299, 4294901760
        %343 = vmatpush1.xpose.msra.mxu0 %v342
        %344 = vmatprep.subr.mxu0 0.0
        %v345 = vand.u32 %v300, 4294901760
        %346 = vmatpush1.xpose.msra.mxu0 %v345
        %347 = vmatprep.subr.mxu0 0.0
        %v348 = vand.u32 %v301, 4294901760
        %349 = vmatpush1.xpose.msra.mxu0 %v348
        %350 = vmatprep.subr.mxu0 0.0
        %351 = vmatpush1.xpose.msra.mxu0 0.0
        %352 = vmatprep.subr.mxu0 0.0
        %353 = vmatpush1.xpose.msra.mxu0 0.0
        %354 = vmatprep.subr.mxu0 0.0
        %355 = vmatpush1.xpose.msra.mxu0 0.0
        %356 = vmatprep.subr.mxu0 0.0
        %357 = vmatpush1.xpose.msra.mxu0 0.0
        %358 = vmatprep.subr.mxu0 0.0
        %359 = vmatpush1.xpose.msra.mxu0 0.0
        %360 = vmatprep.subr.mxu0 0.0
        %361 = vmatpush1.xpose.msra.mxu0 0.0
        %362 = vmatprep.subr.mxu0 0.0
        %363 = vmatpush1.xpose.msra.mxu0 0.0
        %364 = vmatprep.subr.mxu0 0.0
        %365 = vmatpush1.xpose.msra.mxu0 0.0
        %366 = vmatprep.subr.mxu0 0.0
        %367 = vmatpush1.xpose.msra.mxu0 0.0
        %368 = vmatprep.subr.mxu0 0.0
        %369 = vmatpush1.xpose.msra.mxu0 0.0
        %370 = vmatprep.subr.mxu0 0.0
        %371 = vmatpush1.xpose.msra.mxu0 0.0
        %372 = vmatprep.subr.mxu0 0.0
        %373 = vmatpush1.xpose.msra.mxu0 0.0
        %374 = vmatprep.subr.mxu0 0.0
        %375 = vmatpush1.xpose.msra.mxu0 0.0
        %376 = vmatprep.subr.mxu0 0.0
        %377 = vmatpush1.xpose.msra.mxu0 0.0
        %378 = vmatprep.subr.mxu0 0.0
        %379 = vmatpush1.xpose.msra.mxu0 0.0
        %380 = vmatprep.subr.mxu0 0.0
        %381 = vmatpush1.xpose.msra.mxu0 0.0
        %382 = vmatprep.mubr.f32.mxu0 0.0
        %v383 = vand.u32 %v285, 4294901760
        %v384 = vsub.f32 %v285, %v383
        %v385 = vand.u32 %v384, 4294901760
        %v386 = vsub.f32 %v384, %v385
        %v387 = vand.u32 %v386, 4294901760
        %388 = vmatmul.mubr.f32.gmra.mrb[0].mxu0 %v387
        %v389 = vpop.f32.mrb[0].mxu0
        %v390 = vadd.f32 0.0, %v389
        %v391 = vpop.f32.mrb[0].mxu0
        %392 = vdwg.mxu0
        %393 = vmatprep.subr.mxu0 0.0
        %v394 = vand.u32 %v286, 4294901760
        %v395 = vsub.f32 %v286, %v394
        %v396 = vand.u32 %v395, 4294901760
        %v397 = vsub.f32 %v395, %v396
        %v398 = vand.u32 %v397, 4294901760
        %399 = vmatpush1.xpose.msra.mxu0 %v398
        %400 = vmatprep.subr.mxu0 0.0
        %v401 = vand.u32 %v287, 4294901760
        %v402 = vsub.f32 %v287, %v401
        %v403 = vand.u32 %v402, 4294901760
        %v404 = vsub.f32 %v402, %v403
        %v405 = vand.u32 %v404, 4294901760
        %406 = vmatpush1.xpose.msra.mxu0 %v405
        %407 = vmatprep.subr.mxu0 0.0
        %v408 = vand.u32 %v288, 4294901760
        %v409 = vsub.f32 %v288, %v408
        %v410 = vand.u32 %v409, 4294901760
        %v411 = vsub.f32 %v409, %v410
        %v412 = vand.u32 %v411, 4294901760
        %413 = vmatpush1.xpose.msra.mxu0 %v412
        %414 = vmatprep.subr.mxu0 0.0
        %v415 = vand.u32 %v289, 4294901760
        %v416 = vsub.f32 %v289, %v415
        %v417 = vand.u32 %v416, 4294901760
        %v418 = vsub.f32 %v416, %v417
        %v419 = vand.u32 %v418, 4294901760
        %420 = vmatpush1.xpose.msra.mxu0 %v419
        %421 = vmatprep.subr.mxu0 0.0
        %v422 = vand.u32 %v290, 4294901760
        %v423 = vsub.f32 %v290, %v422
        %v424 = vand.u32 %v423, 4294901760
        %v425 = vsub.f32 %v423, %v424
        %v426 = vand.u32 %v425, 4294901760
        %427 = vmatpush1.xpose.msra.mxu0 %v426
        %428 = vmatprep.subr.mxu0 0.0
        %v429 = vand.u32 %v291, 4294901760
        %v430 = vsub.f32 %v291, %v429
        %v431 = vand.u32 %v430, 4294901760
        %v432 = vsub.f32 %v430, %v431
        %v433 = vand.u32 %v432, 4294901760
        %434 = vmatpush1.xpose.msra.mxu0 %v433
        %435 = vmatprep.subr.mxu0 0.0
        %v436 = vand.u32 %v292, 4294901760
        %v437 = vsub.f32 %v292, %v436
        %v438 = vand.u32 %v437, 4294901760
        %v439 = vsub.f32 %v437, %v438
        %v440 = vand.u32 %v439, 4294901760
        %441 = vmatpush1.xpose.msra.mxu0 %v440
        %442 = vmatprep.subr.mxu0 0.0
        %v443 = vand.u32 %v293, 4294901760
        %v444 = vsub.f32 %v293, %v443
        %v445 = vand.u32 %v444, 4294901760
        %v446 = vsub.f32 %v444, %v445
        %v447 = vand.u32 %v446, 4294901760
        %448 = vmatpush1.xpose.msra.mxu0 %v447
        %449 = vmatprep.subr.mxu0 0.0
        %v450 = vand.u32 %v294, 4294901760
        %v451 = vsub.f32 %v294, %v450
        %v452 = vand.u32 %v451, 4294901760
        %v453 = vsub.f32 %v451, %v452
        %v454 = vand.u32 %v453, 4294901760
        %455 = vmatpush1.xpose.msra.mxu0 %v454
        %456 = vmatprep.subr.mxu0 0.0
        %v457 = vand.u32 %v295, 4294901760
        %v458 = vsub.f32 %v295, %v457
        %v459 = vand.u32 %v458, 4294901760
        %v460 = vsub.f32 %v458, %v459
        %v461 = vand.u32 %v460, 4294901760
        %462 = vmatpush1.xpose.msra.mxu0 %v461
        %463 = vmatprep.subr.mxu0 0.0
        %v464 = vand.u32 %v296, 4294901760
        %v465 = vsub.f32 %v296, %v464
        %v466 = vand.u32 %v465, 4294901760
        %v467 = vsub.f32 %v465, %v466
        %v468 = vand.u32 %v467, 4294901760
        %469 = vmatpush1.xpose.msra.mxu0 %v468
        %470 = vmatprep.subr.mxu0 0.0
        %v471 = vand.u32 %v297, 4294901760
        %v472 = vsub.f32 %v297, %v471
        %v473 = vand.u32 %v472, 4294901760
        %v474 = vsub.f32 %v472, %v473
        %v475 = vand.u32 %v474, 4294901760
        %476 = vmatpush1.xpose.msra.mxu0 %v475
        %477 = vmatprep.subr.mxu0 0.0
        %v478 = vand.u32 %v298, 4294901760
        %v479 = vsub.f32 %v298, %v478
        %v480 = vand.u32 %v479, 4294901760
        %v481 = vsub.f32 %v479, %v480
        %v482 = vand.u32 %v481, 4294901760
        %483 = vmatpush1.xpose.msra.mxu0 %v482
        %484 = vmatprep.subr.mxu0 0.0
        %v485 = vand.u32 %v299, 4294901760
        %v486 = vsub.f32 %v299, %v485
        %v487 = vand.u32 %v486, 4294901760
        %v488 = vsub.f32 %v486, %v487
        %v489 = vand.u32 %v488, 4294901760
        %490 = vmatpush1.xpose.msra.mxu0 %v489
        %491 = vmatprep.subr.mxu0 0.0
        %v492 = vand.u32 %v300, 4294901760
        %v493 = vsub.f32 %v300, %v492
        %v494 = vand.u32 %v493, 4294901760
        %v495 = vsub.f32 %v493, %v494
        %v496 = vand.u32 %v495, 4294901760
        %497 = vmatpush1.xpose.msra.mxu0 %v496
        %498 = vmatprep.subr.mxu0 0.0
        %v499 = vand.u32 %v301, 4294901760
        %v500 = vsub.f32 %v301, %v499
        %v501 = vand.u32 %v500, 4294901760
        %v502 = vsub.f32 %v500, %v501
        %v503 = vand.u32 %v502, 4294901760
        %504 = vmatpush1.xpose.msra.mxu0 %v503
        %505 = vmatprep.subr.mxu0 0.0
        %506 = vmatpush1.xpose.msra.mxu0 0.0
        %507 = vmatprep.subr.mxu0 0.0
        %508 = vmatpush1.xpose.msra.mxu0 0.0
        %509 = vmatprep.subr.mxu0 0.0
        %510 = vmatpush1.xpose.msra.mxu0 0.0
        %511 = vmatprep.subr.mxu0 0.0
        %512 = vmatpush1.xpose.msra.mxu0 0.0
        %513 = vmatprep.subr.mxu0 0.0
        %514 = vmatpush1.xpose.msra.mxu0 0.0
        %515 = vmatprep.subr.mxu0 0.0
        %516 = vmatpush1.xpose.msra.mxu0 0.0
        %517 = vmatprep.subr.mxu0 0.0
        %518 = vmatpush1.xpose.msra.mxu0 0.0
        %519 = vmatprep.subr.mxu0 0.0
        %520 = vmatpush1.xpose.msra.mxu0 0.0
        %521 = vmatprep.subr.mxu0 0.0
        %522 = vmatpush1.xpose.msra.mxu0 0.0
        %523 = vmatprep.subr.mxu0 0.0
        %524 = vmatpush1.xpose.msra.mxu0 0.0
        %525 = vmatprep.subr.mxu0 0.0
        %526 = vmatpush1.xpose.msra.mxu0 0.0
        %527 = vmatprep.subr.mxu0 0.0
        %528 = vmatpush1.xpose.msra.mxu0 0.0
        %529 = vmatprep.subr.mxu0 0.0
        %530 = vmatpush1.xpose.msra.mxu0 0.0
        %531 = vmatprep.subr.mxu0 0.0
        %532 = vmatpush1.xpose.msra.mxu0 0.0
        %533 = vmatprep.subr.mxu0 0.0
        %534 = vmatpush1.xpose.msra.mxu0 0.0
        %535 = vmatprep.subr.mxu0 0.0
        %536 = vmatpush1.xpose.msra.mxu0 0.0
        %537 = vmatprep.mubr.f32.mxu0 0.0
        %v538 = vand.u32 %v285, 4294901760
        %539 = vmatmul.mubr.f32.gmra.mrb[0].mxu0 %v538
        %v540 = vpop.f32.mrb[0].mxu0
        %v541 = vadd.f32 %v390, %v540
        %v542 = vpop.f32.mrb[0].mxu0
        %543 = vdwg.mxu0
        %544 = vmatprep.subr.mxu0 0.0
        %v545 = vand.u32 %v286, 4294901760
        %v546 = vsub.f32 %v286, %v545
        %547 = vmatpush1.xpose.msra.mxu0 %v546
        %548 = vmatprep.subr.mxu0 0.0
        %v549 = vand.u32 %v287, 4294901760
        %v550 = vsub.f32 %v287, %v549
        %551 = vmatpush1.xpose.msra.mxu0 %v550
        %552 = vmatprep.subr.mxu0 0.0
        %v553 = vand.u32 %v288, 4294901760
        %v554 = vsub.f32 %v288, %v553
        %555 = vmatpush1.xpose.msra.mxu0 %v554
        %556 = vmatprep.subr.mxu0 0.0
        %v557 = vand.u32 %v289, 4294901760
        %v558 = vsub.f32 %v289, %v557
        %559 = vmatpush1.xpose.msra.mxu0 %v558
        %560 = vmatprep.subr.mxu0 0.0
        %v561 = vand.u32 %v290, 4294901760
        %v562 = vsub.f32 %v290, %v561
        %563 = vmatpush1.xpose.msra.mxu0 %v562
        %564 = vmatprep.subr.mxu0 0.0
        %v565 = vand.u32 %v291, 4294901760
        %v566 = vsub.f32 %v291, %v565
        %567 = vmatpush1.xpose.msra.mxu0 %v566
        %568 = vmatprep.subr.mxu0 0.0
        %v569 = vand.u32 %v292, 4294901760
        %v570 = vsub.f32 %v292, %v569
        %571 = vmatpush1.xpose.msra.mxu0 %v570
        %572 = vmatprep.subr.mxu0 0.0
        %v573 = vand.u32 %v293, 4294901760
        %v574 = vsub.f32 %v293, %v573
        %575 = vmatpush1.xpose.msra.mxu0 %v574
        %576 = vmatprep.subr.mxu0 0.0
        %v577 = vand.u32 %v294, 4294901760
        %v578 = vsub.f32 %v294, %v577
        %579 = vmatpush1.xpose.msra.mxu0 %v578
        %580 = vmatprep.subr.mxu0 0.0
        %v581 = vand.u32 %v295, 4294901760
        %v582 = vsub.f32 %v295, %v581
        %583 = vmatpush1.xpose.msra.mxu0 %v582
        %584 = vmatprep.subr.mxu0 0.0
        %v585 = vand.u32 %v296, 4294901760
        %v586 = vsub.f32 %v296, %v585
        %587 = vmatpush1.xpose.msra.mxu0 %v586
        %588 = vmatprep.subr.mxu0 0.0
        %v589 = vand.u32 %v297, 4294901760
        %v590 = vsub.f32 %v297, %v589
        %591 = vmatpush1.xpose.msra.mxu0 %v590
        %592 = vmatprep.subr.mxu0 0.0
        %v593 = vand.u32 %v298, 4294901760
        %v594 = vsub.f32 %v298, %v593
        %595 = vmatpush1.xpose.msra.mxu0 %v594
        %596 = vmatprep.subr.mxu0 0.0
        %v597 = vand.u32 %v299, 4294901760
        %v598 = vsub.f32 %v299, %v597
        %599 = vmatpush1.xpose.msra.mxu0 %v598
        %600 = vmatprep.subr.mxu0 0.0
        %v601 = vand.u32 %v300, 4294901760
        %v602 = vsub.f32 %v300, %v601
        %603 = vmatpush1.xpose.msra.mxu0 %v602
        %604 = vmatprep.subr.mxu0 0.0
        %v605 = vand.u32 %v301, 4294901760
        %v606 = vsub.f32 %v301, %v605
        %607 = vmatpush1.xpose.msra.mxu0 %v606
        %608 = vmatprep.subr.mxu0 0.0
        %609 = vmatpush1.xpose.msra.mxu0 0.0
        %610 = vmatprep.subr.mxu0 0.0
        %611 = vmatpush1.xpose.msra.mxu0 0.0
        %612 = vmatprep.subr.mxu0 0.0
        %613 = vmatpush1.xpose.msra.mxu0 0.0
        %614 = vmatprep.subr.mxu0 0.0
        %615 = vmatpush1.xpose.msra.mxu0 0.0
        %616 = vmatprep.subr.mxu0 0.0
        %617 = vmatpush1.xpose.msra.mxu0 0.0
        %618 = vmatprep.subr.mxu0 0.0
        %619 = vmatpush1.xpose.msra.mxu0 0.0
        %620 = vmatprep.subr.mxu0 0.0
        %621 = vmatpush1.xpose.msra.mxu0 0.0
        %622 = vmatprep.subr.mxu0 0.0
        %623 = vmatpush1.xpose.msra.mxu0 0.0
        %624 = vmatprep.subr.mxu0 0.0
        %625 = vmatpush1.xpose.msra.mxu0 0.0
        %626 = vmatprep.subr.mxu0 0.0
        %627 = vmatpush1.xpose.msra.mxu0 0.0
        %628 = vmatprep.subr.mxu0 0.0
        %629 = vmatpush1.xpose.msra.mxu0 0.0
        %630 = vmatprep.subr.mxu0 0.0
        %631 = vmatpush1.xpose.msra.mxu0 0.0
        %632 = vmatprep.subr.mxu0 0.0
        %633 = vmatpush1.xpose.msra.mxu0 0.0
        %634 = vmatprep.subr.mxu0 0.0
        %635 = vmatpush1.xpose.msra.mxu0 0.0
        %636 = vmatprep.subr.mxu0 0.0
        %637 = vmatpush1.xpose.msra.mxu0 0.0
        %638 = vmatprep.subr.mxu0 0.0
        %639 = vmatpush1.xpose.msra.mxu0 0.0
        %640 = vmatprep.mubr.f32.mxu0 0.0
        %v641 = vand.u32 %v285, 4294901760
        %v642 = vsub.f32 %v285, %v641
        %643 = vmatmul.mubr.f32.gmra.mrb[0].mxu0 %v642
        %v644 = vpop.f32.mrb[0].mxu0
        %v645 = vadd.f32 %v541, %v644
        %v646 = vpop.f32.mrb[0].mxu0
        %647 = vdwg.mxu0
        %648 = vmatprep.subr.mxu0 0.0
        %v649 = vand.u32 %v286, 4294901760
        %650 = vmatpush1.xpose.msra.mxu0 %v649
        %651 = vmatprep.subr.mxu0 0.0
        %v652 = vand.u32 %v287, 4294901760
        %653 = vmatpush1.xpose.msra.mxu0 %v652
        %654 = vmatprep.subr.mxu0 0.0
        %v655 = vand.u32 %v288, 4294901760
        %656 = vmatpush1.xpose.msra.mxu0 %v655
        %657 = vmatprep.subr.mxu0 0.0
        %v658 = vand.u32 %v289, 4294901760
        %659 = vmatpush1.xpose.msra.mxu0 %v658
        %660 = vmatprep.subr.mxu0 0.0
        %v661 = vand.u32 %v290, 4294901760
        %662 = vmatpush1.xpose.msra.mxu0 %v661
        %663 = vmatprep.subr.mxu0 0.0
        %v664 = vand.u32 %v291, 4294901760
        %665 = vmatpush1.xpose.msra.mxu0 %v664
        %666 = vmatprep.subr.mxu0 0.0
        %v667 = vand.u32 %v292, 4294901760
        %668 = vmatpush1.xpose.msra.mxu0 %v667
        %669 = vmatprep.subr.mxu0 0.0
        %v670 = vand.u32 %v293, 4294901760
        %671 = vmatpush1.xpose.msra.mxu0 %v670
        %672 = vmatprep.subr.mxu0 0.0
        %v673 = vand.u32 %v294, 4294901760
        %674 = vmatpush1.xpose.msra.mxu0 %v673
        %675 = vmatprep.subr.mxu0 0.0
        %v676 = vand.u32 %v295, 4294901760
        %677 = vmatpush1.xpose.msra.mxu0 %v676
        %678 = vmatprep.subr.mxu0 0.0
        %v679 = vand.u32 %v296, 4294901760
        %680 = vmatpush1.xpose.msra.mxu0 %v679
        %681 = vmatprep.subr.mxu0 0.0
        %v682 = vand.u32 %v297, 4294901760
        %683 = vmatpush1.xpose.msra.mxu0 %v682
        %684 = vmatprep.subr.mxu0 0.0
        %v685 = vand.u32 %v298, 4294901760
        %686 = vmatpush1.xpose.msra.mxu0 %v685
        %687 = vmatprep.subr.mxu0 0.0
        %v688 = vand.u32 %v299, 4294901760
        %689 = vmatpush1.xpose.msra.mxu0 %v688
        %690 = vmatprep.subr.mxu0 0.0
        %v691 = vand.u32 %v300, 4294901760
        %692 = vmatpush1.xpose.msra.mxu0 %v691
        %693 = vmatprep.subr.mxu0 0.0
        %v694 = vand.u32 %v301, 4294901760
        %695 = vmatpush1.xpose.msra.mxu0 %v694
        %696 = vmatprep.subr.mxu0 0.0
        %697 = vmatpush1.xpose.msra.mxu0 0.0
        %698 = vmatprep.subr.mxu0 0.0
        %699 = vmatpush1.xpose.msra.mxu0 0.0
        %700 = vmatprep.subr.mxu0 0.0
        %701 = vmatpush1.xpose.msra.mxu0 0.0
        %702 = vmatprep.subr.mxu0 0.0
        %703 = vmatpush1.xpose.msra.mxu0 0.0
        %704 = vmatprep.subr.mxu0 0.0
        %705 = vmatpush1.xpose.msra.mxu0 0.0
        %706 = vmatprep.subr.mxu0 0.0
        %707 = vmatpush1.xpose.msra.mxu0 0.0
        %708 = vmatprep.subr.mxu0 0.0
        %709 = vmatpush1.xpose.msra.mxu0 0.0
        %710 = vmatprep.subr.mxu0 0.0
        %711 = vmatpush1.xpose.msra.mxu0 0.0
        %712 = vmatprep.subr.mxu0 0.0
        %713 = vmatpush1.xpose.msra.mxu0 0.0
        %714 = vmatprep.subr.mxu0 0.0
        %715 = vmatpush1.xpose.msra.mxu0 0.0
        %716 = vmatprep.subr.mxu0 0.0
        %717 = vmatpush1.xpose.msra.mxu0 0.0
        %718 = vmatprep.subr.mxu0 0.0
        %719 = vmatpush1.xpose.msra.mxu0 0.0
        %720 = vmatprep.subr.mxu0 0.0
        %721 = vmatpush1.xpose.msra.mxu0 0.0
        %722 = vmatprep.subr.mxu0 0.0
        %723 = vmatpush1.xpose.msra.mxu0 0.0
        %724 = vmatprep.subr.mxu0 0.0
        %725 = vmatpush1.xpose.msra.mxu0 0.0
        %726 = vmatprep.subr.mxu0 0.0
        %727 = vmatpush1.xpose.msra.mxu0 0.0
        %728 = vmatprep.mubr.f32.mxu0 0.0
        %v729 = vand.u32 %v285, 4294901760
        %v730 = vsub.f32 %v285, %v729
        %v731 = vand.u32 %v730, 4294901760
        %732 = vmatmul.mubr.f32.gmra.mrb[0].mxu0 %v731
        %v733 = vpop.f32.mrb[0].mxu0
        %v734 = vadd.f32 %v645, %v733
        %v735 = vpop.f32.mrb[0].mxu0
        %736 = vdwg.mxu0
        %737 = vmatprep.subr.mxu0 0.0
        %v738 = vand.u32 %v286, 4294901760
        %v739 = vsub.f32 %v286, %v738
        %v740 = vand.u32 %v739, 4294901760
        %741 = vmatpush1.xpose.msra.mxu0 %v740
        %742 = vmatprep.subr.mxu0 0.0
        %v743 = vand.u32 %v287, 4294901760
        %v744 = vsub.f32 %v287, %v743
        %v745 = vand.u32 %v744, 4294901760
        %746 = vmatpush1.xpose.msra.mxu0 %v745
        %747 = vmatprep.subr.mxu0 0.0
        %v748 = vand.u32 %v288, 4294901760
        %v749 = vsub.f32 %v288, %v748
        %v750 = vand.u32 %v749, 4294901760
        %751 = vmatpush1.xpose.msra.mxu0 %v750
        %752 = vmatprep.subr.mxu0 0.0
        %v753 = vand.u32 %v289, 4294901760
        %v754 = vsub.f32 %v289, %v753
        %v755 = vand.u32 %v754, 4294901760
        %756 = vmatpush1.xpose.msra.mxu0 %v755
        %757 = vmatprep.subr.mxu0 0.0
        %v758 = vand.u32 %v290, 4294901760
        %v759 = vsub.f32 %v290, %v758
        %v760 = vand.u32 %v759, 4294901760
        %761 = vmatpush1.xpose.msra.mxu0 %v760
        %762 = vmatprep.subr.mxu0 0.0
        %v763 = vand.u32 %v291, 4294901760
        %v764 = vsub.f32 %v291, %v763
        %v765 = vand.u32 %v764, 4294901760
        %766 = vmatpush1.xpose.msra.mxu0 %v765
        %767 = vmatprep.subr.mxu0 0.0
        %v768 = vand.u32 %v292, 4294901760
        %v769 = vsub.f32 %v292, %v768
        %v770 = vand.u32 %v769, 4294901760
        %771 = vmatpush1.xpose.msra.mxu0 %v770
        %772 = vmatprep.subr.mxu0 0.0
        %v773 = vand.u32 %v293, 4294901760
        %v774 = vsub.f32 %v293, %v773
        %v775 = vand.u32 %v774, 4294901760
        %776 = vmatpush1.xpose.msra.mxu0 %v775
        %777 = vmatprep.subr.mxu0 0.0
        %v778 = vand.u32 %v294, 4294901760
        %v779 = vsub.f32 %v294, %v778
        %v780 = vand.u32 %v779, 4294901760
        %781 = vmatpush1.xpose.msra.mxu0 %v780
        %782 = vmatprep.subr.mxu0 0.0
        %v783 = vand.u32 %v295, 4294901760
        %v784 = vsub.f32 %v295, %v783
        %v785 = vand.u32 %v784, 4294901760
        %786 = vmatpush1.xpose.msra.mxu0 %v785
        %787 = vmatprep.subr.mxu0 0.0
        %v788 = vand.u32 %v296, 4294901760
        %v789 = vsub.f32 %v296, %v788
        %v790 = vand.u32 %v789, 4294901760
        %791 = vmatpush1.xpose.msra.mxu0 %v790
        %792 = vmatprep.subr.mxu0 0.0
        %v793 = vand.u32 %v297, 4294901760
        %v794 = vsub.f32 %v297, %v793
        %v795 = vand.u32 %v794, 4294901760
        %796 = vmatpush1.xpose.msra.mxu0 %v795
        %797 = vmatprep.subr.mxu0 0.0
        %v798 = vand.u32 %v298, 4294901760
        %v799 = vsub.f32 %v298, %v798
        %v800 = vand.u32 %v799, 4294901760
        %801 = vmatpush1.xpose.msra.mxu0 %v800
        %802 = vmatprep.subr.mxu0 0.0
        %v803 = vand.u32 %v299, 4294901760
        %v804 = vsub.f32 %v299, %v803
        %v805 = vand.u32 %v804, 4294901760
        %806 = vmatpush1.xpose.msra.mxu0 %v805
        %807 = vmatprep.subr.mxu0 0.0
        %v808 = vand.u32 %v300, 4294901760
        %v809 = vsub.f32 %v300, %v808
        %v810 = vand.u32 %v809, 4294901760
        %811 = vmatpush1.xpose.msra.mxu0 %v810
        %812 = vmatprep.subr.mxu0 0.0
        %v813 = vand.u32 %v301, 4294901760
        %v814 = vsub.f32 %v301, %v813
        %v815 = vand.u32 %v814, 4294901760
        %816 = vmatpush1.xpose.msra.mxu0 %v815
        %817 = vmatprep.subr.mxu0 0.0
        %818 = vmatpush1.xpose.msra.mxu0 0.0
        %819 = vmatprep.subr.mxu0 0.0
        %820 = vmatpush1.xpose.msra.mxu0 0.0
        %821 = vmatprep.subr.mxu0 0.0
        %822 = vmatpush1.xpose.msra.mxu0 0.0
        %823 = vmatprep.subr.mxu0 0.0
        %824 = vmatpush1.xpose.msra.mxu0 0.0
        %825 = vmatprep.subr.mxu0 0.0
        %826 = vmatpush1.xpose.msra.mxu0 0.0
        %827 = vmatprep.subr.mxu0 0.0
        %828 = vmatpush1.xpose.msra.mxu0 0.0
        %829 = vmatprep.subr.mxu0 0.0
        %830 = vmatpush1.xpose.msra.mxu0 0.0
        %831 = vmatprep.subr.mxu0 0.0
        %832 = vmatpush1.xpose.msra.mxu0 0.0
        %833 = vmatprep.subr.mxu0 0.0
        %834 = vmatpush1.xpose.msra.mxu0 0.0
        %835 = vmatprep.subr.mxu0 0.0
        %836 = vmatpush1.xpose.msra.mxu0 0.0
        %837 = vmatprep.subr.mxu0 0.0
        %838 = vmatpush1.xpose.msra.mxu0 0.0
        %839 = vmatprep.subr.mxu0 0.0
        %840 = vmatpush1.xpose.msra.mxu0 0.0
        %841 = vmatprep.subr.mxu0 0.0
        %842 = vmatpush1.xpose.msra.mxu0 0.0
        %843 = vmatprep.subr.mxu0 0.0
        %844 = vmatpush1.xpose.msra.mxu0 0.0
        %845 = vmatprep.subr.mxu0 0.0
        %846 = vmatpush1.xpose.msra.mxu0 0.0
        %847 = vmatprep.subr.mxu0 0.0
        %848 = vmatpush1.xpose.msra.mxu0 0.0
        %849 = vmatprep.mubr.f32.mxu0 0.0
        %v850 = vand.u32 %v285, 4294901760
        %851 = vmatmul.mubr.f32.gmra.mrb[0].mxu0 %v850
        %v852 = vpop.f32.mrb[0].mxu0
        %v853 = vadd.f32 %v734, %v852
        %v854 = vpop.f32.mrb[0].mxu0
        %855 = vdwg.mxu0
        %856 = vmatprep.subr.mxu0 0.0
        %v857 = vand.u32 %v286, 4294901760
        %858 = vmatpush1.xpose.msra.mxu0 %v857
        %859 = vmatprep.subr.mxu0 0.0
        %v860 = vand.u32 %v287, 4294901760
        %861 = vmatpush1.xpose.msra.mxu0 %v860
        %862 = vmatprep.subr.mxu0 0.0
        %v863 = vand.u32 %v288, 4294901760
        %864 = vmatpush1.xpose.msra.mxu0 %v863
        %865 = vmatprep.subr.mxu0 0.0
        %v866 = vand.u32 %v289, 4294901760
        %867 = vmatpush1.xpose.msra.mxu0 %v866
        %868 = vmatprep.subr.mxu0 0.0
        %v869 = vand.u32 %v290, 4294901760
        %870 = vmatpush1.xpose.msra.mxu0 %v869
        %871 = vmatprep.subr.mxu0 0.0
        %v872 = vand.u32 %v291, 4294901760
        %873 = vmatpush1.xpose.msra.mxu0 %v872
        %874 = vmatprep.subr.mxu0 0.0
        %v875 = vand.u32 %v292, 4294901760
        %876 = vmatpush1.xpose.msra.mxu0 %v875
        %877 = vmatprep.subr.mxu0 0.0
        %v878 = vand.u32 %v293, 4294901760
        %879 = vmatpush1.xpose.msra.mxu0 %v878
        %880 = vmatprep.subr.mxu0 0.0
        %v881 = vand.u32 %v294, 4294901760
        %882 = vmatpush1.xpose.msra.mxu0 %v881
        %883 = vmatprep.subr.mxu0 0.0
        %v884 = vand.u32 %v295, 4294901760
        %885 = vmatpush1.xpose.msra.mxu0 %v884
        %886 = vmatprep.subr.mxu0 0.0
        %v887 = vand.u32 %v296, 4294901760
        %888 = vmatpush1.xpose.msra.mxu0 %v887
        %889 = vmatprep.subr.mxu0 0.0
        %v890 = vand.u32 %v297, 4294901760
        %891 = vmatpush1.xpose.msra.mxu0 %v890
        %892 = vmatprep.subr.mxu0 0.0
        %v893 = vand.u32 %v298, 4294901760
        %894 = vmatpush1.xpose.msra.mxu0 %v893
        %895 = vmatprep.subr.mxu0 0.0
        %v896 = vand.u32 %v299, 4294901760
        %897 = vmatpush1.xpose.msra.mxu0 %v896
        %898 = vmatprep.subr.mxu0 0.0
        %v899 = vand.u32 %v300, 4294901760
        %900 = vmatpush1.xpose.msra.mxu0 %v899
        %901 = vmatprep.subr.mxu0 0.0
        %v902 = vand.u32 %v301, 4294901760
        %903 = vmatpush1.xpose.msra.mxu0 %v902
        %904 = vmatprep.subr.mxu0 0.0
        %905 = vmatpush1.xpose.msra.mxu0 0.0
        %906 = vmatprep.subr.mxu0 0.0
        %907 = vmatpush1.xpose.msra.mxu0 0.0
        %908 = vmatprep.subr.mxu0 0.0
        %909 = vmatpush1.xpose.msra.mxu0 0.0
        %910 = vmatprep.subr.mxu0 0.0
        %911 = vmatpush1.xpose.msra.mxu0 0.0
        %912 = vmatprep.subr.mxu0 0.0
        %913 = vmatpush1.xpose.msra.mxu0 0.0
        %914 = vmatprep.subr.mxu0 0.0
        %915 = vmatpush1.xpose.msra.mxu0 0.0
        %916 = vmatprep.subr.mxu0 0.0
        %917 = vmatpush1.xpose.msra.mxu0 0.0
        %918 = vmatprep.subr.mxu0 0.0
        %919 = vmatpush1.xpose.msra.mxu0 0.0
        %920 = vmatprep.subr.mxu0 0.0
        %921 = vmatpush1.xpose.msra.mxu0 0.0
        %922 = vmatprep.subr.mxu0 0.0
        %923 = vmatpush1.xpose.msra.mxu0 0.0
        %924 = vmatprep.subr.mxu0 0.0
        %925 = vmatpush1.xpose.msra.mxu0 0.0
        %926 = vmatprep.subr.mxu0 0.0
        %927 = vmatpush1.xpose.msra.mxu0 0.0
        %928 = vmatprep.subr.mxu0 0.0
        %929 = vmatpush1.xpose.msra.mxu0 0.0
        %930 = vmatprep.subr.mxu0 0.0
        %931 = vmatpush1.xpose.msra.mxu0 0.0
        %932 = vmatprep.subr.mxu0 0.0
        %933 = vmatpush1.xpose.msra.mxu0 0.0
        %934 = vmatprep.subr.mxu0 0.0
        %935 = vmatpush1.xpose.msra.mxu0 0.0
        %936 = vmatprep.mubr.f32.mxu0 0.0
        %v937 = vand.u32 %v285, 4294901760
        %938 = vmatmul.mubr.f32.gmra.mrb[0].mxu0 %v937
        %v939 = vpop.f32.mrb[0].mxu0
        %v940 = vadd.f32 %v853, %v939
        %v941 = vpop.f32.mrb[0].mxu0
        %942 = vdwg.mxu0
        %v943 = vld [vmem:[%s262] sm:$0x1]
        %v945 = vlaneseq
        %v946 = vshrl.u32 %v945, 7
        %v947 = vsub.s32 0, %v946
        %v948 = vrot.slane %v943, %v947
        %v950 = vmul.f32 %v940, %v948
        %v951 = vld [vmem:[%s0] sm:$0xff]
        %v952 = vlaneseq
        %v953 = vand.u32 %v952, 127
        %s954 = smul.u32 %s266, 128
        %v955 = vstv %s954
        %v956 = vadd.s32 %v953, %v955
        %957 = vset.pattern.permute.xlu0 0
        %958 = vperm.xlu0 %957, %v951
        %v959 = vpop.permute.xlu0 %958
        %vm960 = vcmp.eq.s32.totalorder %v956, %v959
        %v961 = vld [vmem:[#allocation3] sm:$0xff]
        %v962 = vsel %vm960, %v950, 0.0
        %963 = vadd.xlane.f32.xlu0 %v962
        %v964 = vpop.xlane.xlu0 %963
        %v965 = vadd.f32 %v961, %v964
        %vm966 = vcmask 7168
        %967 = vst.msk [vmem:[#allocation3] sm:$0xff] %vm966, %v965
        %vm968 = vmxor %vm960, 1
        %vm969 = vcmp.lt.s32.totalorder %v956, 300
        %v970 = vsel %vm969, 1, 0
        %vm971 = vcmp.eq.s32.totalorder %v970, 1
        %vm972 = vmand %vm968, %vm971
        %v973 = vsub.f32 %v950, -0.1
        %v974 = vmul.f32 %v973, 32.0
        %v975 = vsel %vm972, %v974, -1e+30
        %v976 = vrot.slane %v975, 4
        %v977 = vmax.f32 %v975, %v976
        %v978 = vrot.slane %v977, 2
        %v979 = vmax.f32 %v977, %v978
        %v980 = vrot.slane %v979, 1
        %v981 = vmax.f32 %v979, %v980
        %v982 = vmax.f32 %v981, 0.0
        %v983 = vsub.f32 %v975, %v982
        %v984 = vmul.f32 %v983, 1.442695
        %v985 = vpow.pop %v984
        %v986 = vrot.slane %v985, 4
        %v987 = vadd.f32 %v985, %v986
        %v988 = vrot.slane %v987, 2
        %v989 = vadd.f32 %v987, %v988
        %v990 = vrot.slane %v989, 1
        %v991 = vadd.f32 %v989, %v990
        %v992 = vsub.f32 0.0, %v982
        %v993 = vmul.f32 %v992, 1.442695
        %v994 = vpow.pop %v993
        %v995 = vadd.f32 %v991, %v994
        %v996 = vld [vmem:[#allocation6] sm:$0x1]
        %v997 = vlog2.pop %v995
        %v998 = vmul.f32 %v997, 0.6931472
        %v999 = vadd.f32 %v982, %v998
        %1000 = vadd.xlane.f32.xlu0 %v999
        %v1001 = vpop.xlane.xlu0 %1000
        %v1002 = vadd.f32 %v996, %v1001
        %vm1003 = vcmask 0
        %1004 = vst.msk [vmem:[#allocation6] sm:$0x1] %vm1003, %v1002
        %p1005 = scmp.eq.s32.totalorder %s26, 1
        // Predicated region
        $region45: #{tpu_custom_call.1} parent=35 // pred_check
          %p1006 = pneg %p1005
        $region46: #{tpu_custom_call.1} parent=35 // pred_check_branch
          %1008 = sbr.rel (%p1006) target = $region48
        $region47: #{tpu_custom_call.1} parent=35 // pred_region
          %1009 = vst [vmem:[%s254] sm:$0xff] 0.0
          %v1010 = vld [vmem:[#allocation3] sm:$0xff]
          %1011 = vst.msk [vmem:[%s254] sm:$0xff] %vm966, %v1010
          %v1012 = vld [vmem:[#allocation4] sm:$0xff]
          %1014 = vrot.lane.b32.xlu0 %v1012, 1
          %v1015 = vpop.permute.xlu0 %1014
          %vm1017 = vcmask 15368
          %1018 = vst.msk [vmem:[%s254] sm:$0xff] %vm1017, %v1015
          %v1019 = vld [vmem:[#allocation5] sm:$0xff]
          %1021 = vrot.lane.b32.xlu0 %v1019, 2
          %v1022 = vpop.permute.xlu0 %1021
          %vm1024 = vcmask 23568
          %1025 = vst.msk [vmem:[%s254] sm:$0xff] %vm1024, %v1022
          %v1026 = vld [vmem:[#allocation6] sm:$0x1]
          %v1028 = vlaneseq
          %v1029 = vshrl.u32 %v1028, 7
          %v1030 = vsub.s32 0, %v1029
          %v1031 = vrot.slane %v1026, %v1030
          %1032 = vrot.lane.b32.xlu0 %v1031, 3
          %v1033 = vpop.permute.xlu0 %1032
          %vm1035 = vcmask 24600
          %1036 = vst.msk [vmem:[%s254] sm:$0x1] %vm1035, %v1033
        $region48: #{tpu_custom_call.1} parent=35 // pred_fallthru
          _
        %s1037 = sand.u32 %s143, 1
        %s1038 = scalar_lea.sflag [#allocation9], %s1037
        %s1039 = sand.u32 %s143, 1
        %s1040 = smul.addr %s1039, 8
        %s1041 = scalar_lea.vmem [#allocation10], %s1040
        // Predicated region
        $region49: #{tpu_custom_call.1} parent=35 // pred_check
          %p1042 = pneg %p153
        $region50: #{tpu_custom_call.1} parent=35 // pred_check_branch
          %1044 = sbr.rel (%p1042) target = $region52
        $region51: #{tpu_custom_call.1} parent=35 // pred_region
          %s1046 = ssub.s32 128, 128
          %1047 = vsyncadd %s1038, %s1046
          %s1048 = smul.addr %s25, 128
          %s1049 = scalar_lea.hbm %s4, %s1048
          %s1051 = sshll.u32 %s1041, 4
          %s1052 = int_to_ptr.vmem [resolvable:$true] %s1051
          %1054 = dma.vmem_to_hbm [thread:$0]  %s1052, 128, %s1049, %s1038
        $region52: #{tpu_custom_call.1} parent=35 // pred_fallthru
          _
      $region36: #{tpu_custom_call.1} parent=5 // pred_fallthru
        _
      %p1055 = scmp.le.s32.totalorder 2, %s16
      // Predicated region
      $region53: #{tpu_custom_call.1} parent=5 // pred_check
        %p1056 = pneg %p1055
      $region54: #{tpu_custom_call.1} parent=5 // pred_check_branch
        %1058 = sbr.rel (%p1056) target = $region56
      $region55: #{tpu_custom_call.1} parent=5 // pred_region
        %s1059 = ssub.s32 %s16, 2
        // Predicated region
        $region57: #{tpu_custom_call.1} parent=55 // pred_check
          %p1060 = pneg %p159
        $region58: #{tpu_custom_call.1} parent=55 // pred_check_branch
          %1062 = sbr.rel (%p1060) target = $region60
        $region59: #{tpu_custom_call.1} parent=55 // pred_region
          %s1063 = sand.u32 %s144, 1
          %s1064 = scalar_lea.sflag [#allocation9], %s1063
          %s1065 = sand.u32 %s144, 1
          %s1066 = smul.addr %s1065, 8
          %s1067 = scalar_lea.vmem [#allocation10], %s1066
          %1068 = dma.done %s1064, 128
        $region60: #{tpu_custom_call.1} parent=55 // pred_fallthru
          _
      $region56: #{tpu_custom_call.1} parent=5 // pred_fallthru
        _
    $region6: #{tpu_custom_call.1} parent=1 // loop_footer
      %s20 = sadd.s32 1, %s16
    $region7: #{tpu_custom_call.1} parent=1 // loop_footer_branch
      %15 = sbr.rel target = $region3
    $region8: #{tpu_custom_call.1} parent=1 // loop_exit
      _
    %1069 = vsyncpa [#allocation8], 1
    %s1070 = scalar_lea.sflag [#allocation8], 1
    %1071 = vsyncpa %s1070, 1
    %1072 = vsyncpa [#allocation9], 1
    %s1073 = scalar_lea.sflag [#allocation9], 1
    %1074 = vsyncpa %s1073, 1

</llo_original>
